<compile_context>
chip_gen: v7x
topology: tpu7x:2x2x1
jax: 0.10.0
libtpu: 0.0.40
codegen_flags: <defaults>
</compile_context>

<pallas_src>
import jax
import jax.numpy as jnp
from jax.experimental import pallas as pl
from jax.experimental.pallas import tpu as pltpu

_LANE = 128
_SUBLANE = 8


def _mlp_kernel(x_ref, w1_ref, b1_ref, w2t_ref, b2_ref, o_ref):
    # Layer 1 on the MXU (f32 accumulate); bias-add (VPU) + tanh (EUP) in f32.
    h = jnp.dot(x_ref[...], w1_ref[...], preferred_element_type=jnp.float32)
    h = jnp.tanh(h + b1_ref[...])                                # (bt, H) f32
    # Layer 2: contract the hidden axis so the result lands lane-dense (1, bt)
    # and the final store is an unmasked, full-lane vst.
    out_row = jnp.einsum("oh,bh->ob", w2t_ref[...], h,
                         preferred_element_type=jnp.float32)     # (1, bt)
    o_ref[...] = (out_row + b2_ref[0, 0]).astype(o_ref.dtype)


def _round_up(n, m):
    return ((n + m - 1) // m) * m


def _cdiv(a, b):
    return -(-a // b)


def _vmem_budget_bytes():
    """Per-chip VMEM budget for the tile plan (and the scoped-VMEM limit).

    Half of the physical per-TensorCore VMEM, clamped to [16 MiB, 96 MiB].
    Falls back to a v7x-safe 32 MiB if the hardware query is unavailable.
    """
    cap = 0
    try:
        info = pltpu.get_tpu_info()
        for name in ("vmem_capacity_bytes", "vmem_size_bytes", "vmem_bytes"):
            v = getattr(info, name, None)
            if v:
                cap = int(v)
                break
    except Exception:
        cap = 0
    if not cap:
        cap = 64 * 1024 * 1024          # smallest per-TC VMEM (v7x)
    return int(min(max(cap // 2, 16 * 1024 * 1024), 96 * 1024 * 1024))


def _pick_batch_tile(B, D, H, budget):
    """Pick a batch tile: lane-aligned (128) when possible, sized under the
    per-chip VMEM budget (accounting for f32 lane padding of D and H), big
    enough to amortize per-grid-step overhead, and yielding an even number of
    tiles for B >= 256 so both v7x TensorCores get balanced work."""
    if B < _LANE:
        return _round_up(B, _SUBLANE)            # tiny batch: single small tile

    Dp = _round_up(D, _LANE)                     # lanes actually occupied in VMEM
    Hp = _round_up(H, _LANE)
    # Resident (assume double-buffered) weights: w1, b1, w2^T (f32).
    resident = 2 * (_round_up(D, _SUBLANE) * Hp + 2 * _SUBLANE * Hp) * 4
    # Per batch row: double-buffered x tile + h activation + output-row share.
    per_row = (2 * Dp + 2 * Hp + 2 * _SUBLANE) * 4
    avail = budget - resident - (2 << 20)        # 2 MiB slack for compiler scratch
    max_rows = max(_LANE, avail // per_row) if avail > 0 else _LANE
    tile_cap = max(_LANE, min(8192, (max_rows // _LANE) * _LANE))

    n = max(1, _cdiv(B, tile_cap))
    if B >= 2 * _LANE:
        n = max(n, 2)                            # use both v7x TensorCores
        if n % 2:
            n += 1                               # balanced split across 2 TCs
    tile = _round_up(_cdiv(B, n), _LANE)
    return max(_LANE, min(tile, tile_cap))


def regression_model_forward(x, w1, b1, w2, b2, *, batch_tile=None, use_bf16=False):
    """Forward of Linear(D,100) -> tanh -> Linear(100,1).

    x: (B, D); w1: (D, H); b1: (H,)/(1,H); w2: (H, 1); b2: scalar/(1,1).
    Returns (B, 1) in x.dtype. `use_bf16=True` streams x/w1 in bf16 (halves the
    HBM stream; relax tolerances accordingly).
    """
    B, D = x.shape
    H = w1.shape[1]
    out_dtype = x.dtype

    budget = _vmem_budget_bytes()
    if batch_tile is None:
        batch_tile = _pick_batch_tile(B, D, H, budget)
    batch_tile = max(_SUBLANE, _round_up(int(batch_tile), _SUBLANE))

    num_tiles = _cdiv(B, batch_tile)
    B_pad = num_tiles * batch_tile   # only the OUTPUT is padded; x streams as-is.
    # The last x block may be partial: Pallas masks the DMA; any garbage rows
    # produce garbage in output lanes >= B, which are sliced off below. Rows
    # are independent (no cross-row reduction), so this is safe.

    if use_bf16:
        x_in = x.astype(jnp.bfloat16)
        w1_in = jnp.asarray(w1, jnp.bfloat16)
    else:
        x_in = x
        w1_in = jnp.asarray(w1, x.dtype)
    b1_in = jnp.asarray(b1, jnp.float32).reshape(1, H)          # f32 bias/tanh
    w2t_in = jnp.asarray(w2, jnp.float32).reshape(H, 1).T       # (1, H), lane-major
    b2_in = jnp.asarray(b2, jnp.float32).reshape(1, 1)          # scalar -> SMEM

    out_row = pl.pallas_call(
        _mlp_kernel,
        out_shape=jax.ShapeDtypeStruct((1, B_pad), out_dtype),
        grid_spec=pltpu.PrefetchScalarGridSpec(
            num_scalar_prefetch=0,
            grid=(num_tiles,),
            in_specs=[
                pl.BlockSpec((batch_tile, D), lambda i: (i, 0)),    # x (streamed)
                pl.BlockSpec((D, H), lambda i: (0, 0)),             # w1 (resident)
                pl.BlockSpec((1, H), lambda i: (0, 0)),             # b1 (resident)
                pl.BlockSpec((1, H), lambda i: (0, 0)),             # w2^T (resident)
                pl.BlockSpec(memory_space=pltpu.MemorySpace.SMEM),  # b2 scalar
            ],
            out_specs=pl.BlockSpec((1, batch_tile), lambda i: (0, i)),
        ),
        compiler_params=pltpu.CompilerParams(
            dimension_semantics=("parallel",),
            vmem_limit_bytes=budget,
        ),
    )(x_in, w1_in, b1_in, w2t_in, b2_in)

    return out_row[0, :B].reshape(B, 1)


def init_params(key, input_shape, hidden=100, out=1, dtype=jnp.float32):
    """Deterministic init mimicking PyTorch nn.Linear defaults
    (uniform(-1/sqrt(fan_in), 1/sqrt(fan_in)))."""
    k1, k2, k3, k4 = jax.random.split(key, 4)
    bound1 = 1.0 / jnp.sqrt(jnp.asarray(input_shape, dtype))
    bound2 = 1.0 / jnp.sqrt(jnp.asarray(hidden, dtype))
    w1 = jax.random.uniform(k1, (input_shape, hidden), dtype, -bound1, bound1)
    b1 = jax.random.uniform(k2, (1, hidden), dtype, -bound1, bound1)
    w2 = jax.random.uniform(k3, (hidden, out), dtype, -bound2, bound2)
    b2 = jax.random.uniform(k4, (1, out), dtype, -bound2, bound2)
    return w1, b1, w2, b2


if __name__ == "__main__":
    key = jax.random.PRNGKey(0)
    kx, kp = jax.random.split(key)

    batch, input_shape = 8, 32
    x = jax.random.normal(kx, (batch, input_shape), jnp.float32)
    w1, b1, w2, b2 = init_params(kp, input_shape)

    # Reference: same math as the PyTorch module (Linear -> Tanh -> Linear).
    def ref(xs):
        return jnp.tanh(xs @ w1 + b1) @ w2 + b2

    # Small, single-tile path (no partial blocks).
    y = jax.block_until_ready(regression_model_forward(x, w1, b1, w2, b2))
    assert y.shape == (batch, 1)
    assert jnp.allclose(y, ref(x), atol=1e-5, rtol=1e-5)

    # Multi-tile path with a partial last x block (B not tile-aligned, no pad).
    batch2 = 300
    x2 = jax.random.normal(jax.random.PRNGKey(1), (batch2, input_shape), jnp.float32)
    y2 = jax.block_until_ready(regression_model_forward(x2, w1, b1, w2, b2))
    assert y2.shape == (batch2, 1)
    assert jnp.allclose(y2, ref(x2), atol=1e-5, rtol=1e-5)

    # Explicit-tile path (128-row tiles, 3 tiles, exercises partial block + grid).
    y3 = jax.block_until_ready(
        regression_model_forward(x2, w1, b1, w2, b2, batch_tile=128))
    assert y3.shape == (batch2, 1)
    assert jnp.allclose(y3, ref(x2), atol=1e-5, rtol=1e-5)

    print("KERNEL_OK")
</pallas_src>

<mosaic_0001>
module attributes {stable_mosaic.version = 11 : i64} {
  func.func @_mlp_kernel(%arg0: i32, %arg1: memref<8x32xf32, #tpu.memory_space<vmem>>, %arg2: memref<32x100xf32, #tpu.memory_space<vmem>>, %arg3: memref<1x100xf32, #tpu.memory_space<vmem>>, %arg4: memref<1x100xf32, #tpu.memory_space<vmem>>, %arg5: memref<1x1xf32, #tpu.memory_space<smem>>, %arg6: memref<1x8xf32, #tpu.memory_space<vmem>>) attributes {dimension_semantics = [#tpu.dimension_semantics<parallel>], iteration_bounds = array<i64: 1>, scalar_prefetch = 0 : i64, scratch_operands = 0 : i64, tpu.core_type = #tpu.core_type<tc>, window_params = [{transform_indices = @transform_0, window_bounds = array<i64: 8, 32>}, {pipeline_mode = #tpu.pipeline_mode<synchronous>, transform_indices = @transform_1, window_bounds = array<i64: 32, 100>}, {pipeline_mode = #tpu.pipeline_mode<synchronous>, transform_indices = @transform_2, window_bounds = array<i64: 1, 100>}, {pipeline_mode = #tpu.pipeline_mode<synchronous>, transform_indices = @transform_3, window_bounds = array<i64: 1, 100>}, {transform_indices = @transform_4, window_bounds = array<i64: 1, 1>}, {transform_indices = @transform_5, window_bounds = array<i64: 1, 8>}]} {
    %c0 = arith.constant 0 : index
    %c0_0 = arith.constant 0 : index
    %0 = vector.load %arg1[%c0, %c0_0] : memref<8x32xf32, #tpu.memory_space<vmem>>, vector<8x32xf32>
    %c0_1 = arith.constant 0 : index
    %c0_2 = arith.constant 0 : index
    %1 = vector.load %arg2[%c0_1, %c0_2] : memref<32x100xf32, #tpu.memory_space<vmem>>, vector<32x100xf32>
    %cst = arith.constant dense<0.000000e+00> : vector<8x100xf32>
    %2 = tpu.matmul %0, %1, %cst {dimension_numbers = #tpu.dot_dimension_numbers<[1], [0], [0], [1], [0, 0, 1, 1], [], []>} : vector<8x32xf32>, vector<32x100xf32>, vector<8x100xf32> -> vector<8x100xf32>
    %c0_3 = arith.constant 0 : index
    %c0_4 = arith.constant 0 : index
    %3 = vector.load %arg3[%c0_3, %c0_4] : memref<1x100xf32, #tpu.memory_space<vmem>>, vector<1x100xf32>
    %4 = vector.broadcast %3 : vector<1x100xf32> to vector<8x100xf32>
    %5 = arith.addf %2, %4 : vector<8x100xf32>
    %6 = math.tanh %5 : vector<8x100xf32>
    %c0_5 = arith.constant 0 : index
    %c0_6 = arith.constant 0 : index
    %7 = vector.load %arg4[%c0_5, %c0_6] : memref<1x100xf32, #tpu.memory_space<vmem>>, vector<1x100xf32>
    "tpu.trace_start"() <{level = 10 : i32, message = "oh,bh->ob"}> : () -> ()
    %cst_7 = arith.constant dense<0.000000e+00> : vector<1x8xf32>
    %8 = tpu.matmul %7, %6, %cst_7 {dimension_numbers = #tpu.dot_dimension_numbers<[1], [1], [0], [0], [0, 0, 1, 0], [], []>} : vector<1x100xf32>, vector<8x100xf32>, vector<1x8xf32> -> vector<1x8xf32>
    "tpu.trace_stop"() : () -> ()
    %c0_8 = arith.constant 0 : index
    %c0_9 = arith.constant 0 : index
    %9 = memref.load %arg5[%c0_8, %c0_9] : memref<1x1xf32, #tpu.memory_space<smem>>
    %10 = vector.broadcast %9 : f32 to vector<1x8xf32>
    %11 = arith.addf %8, %10 : vector<1x8xf32>
    %c0_10 = arith.constant 0 : index
    %c0_11 = arith.constant 0 : index
    %12 = vector.load %arg6[%c0_10, %c0_11] : memref<1x8xf32, #tpu.memory_space<vmem>>, vector<1x8xf32>
    tpu.vector_store %arg6[%c0_10, %c0_11], %11 {strides = array<i32>} : memref<1x8xf32, #tpu.memory_space<vmem>>, vector<1x8xf32>,
    return
  }
  func.func @transform_0(%arg0: i32) -> (i32, i32) {
    %c0_i32 = arith.constant 0 : i32
    %c0_i32_0 = arith.constant 0 : i32
    return %arg0, %c0_i32 : i32, i32
  }
  func.func @transform_1(%arg0: i32) -> (i32, i32) {
    %c0_i32 = arith.constant 0 : i32
    %c0_i32_0 = arith.constant 0 : i32
    %c0_i32_1 = arith.constant 0 : i32
    return %c0_i32, %c0_i32_0 : i32, i32
  }
  func.func @transform_2(%arg0: i32) -> (i32, i32) {
    %c0_i32 = arith.constant 0 : i32
    %c0_i32_0 = arith.constant 0 : i32
    %c0_i32_1 = arith.constant 0 : i32
    return %c0_i32, %c0_i32_0 : i32, i32
  }
  func.func @transform_3(%arg0: i32) -> (i32, i32) {
    %c0_i32 = arith.constant 0 : i32
    %c0_i32_0 = arith.constant 0 : i32
    %c0_i32_1 = arith.constant 0 : i32
    return %c0_i32, %c0_i32_0 : i32, i32
  }
  func.func @transform_4(%arg0: i32) -> (i32, i32) {
    %c0_i32 = arith.constant 0 : i32
    %c0_i32_0 = arith.constant 0 : i32
    %c0_i32_1 = arith.constant 0 : i32
    return %c0_i32, %c0_i32_0 : i32, i32
  }
  func.func @transform_5(%arg0: i32) -> (i32, i32) {
    %c0_i32 = arith.constant 0 : i32
    %c0_i32_0 = arith.constant 0 : i32
    return %c0_i32, %arg0 : i32, i32
  }
}

</mosaic_0001>

<llo_original>
// kernel: tpu_custom_call.1
$region0: #{tpu_custom_call.1}
  #allocation0 [shape = 'u32[]', space=smem, size = 0x4, offset = 0x4, fixed_abs, tag = 'smem constant byte address 0x4 - core index']
  #allocation1 [shape = 'u32[144,128]{1,0:T(1,128)}', space=vmem, size = 0x12000, scoped, tag = 'internal scratch']
  #allocation2 [shape = 'f32[1,1]{1,0:T(1,128)S(6)}', space=smem, size = 0x200, scoped, tag = 'scoped memory for tpu_custom_call.1']
  %s0 = inlined_call_operand.hbm [shape: f32[8,32], index: 0, kind: input, shape index: {}]
  %s1 = inlined_call_operand.hbm [shape: f32[32,100], index: 1, kind: input, shape index: {}]
  %s2 = inlined_call_operand.vmem [shape: f32[1,100], index: 2, kind: input, shape index: {}]
  %s3 = inlined_call_operand.vmem [shape: f32[1,100], index: 3, kind: input, shape index: {}]
  %s4 = inlined_call_operand.<no memory space> [shape: f32[1,1], index: 4, kind: input, shape index: {}]
  %s5 = inlined_call_operand.hbm [shape: f32[1,8], index: 5, kind: output, shape index: {}]
  %s6 = sld [smem:[#allocation0]]
  $region38: #{tpu_custom_call.1} parent=0
    _
  %s8 = ssub.s32 1, %s6
  %s9 = scalar_select 0, %s8, %s6
  %10 = sst [smem:[#allocation2]] %s4
  $region1: #{tpu_custom_call.1} parent=0
    #allocation3 [shape = 'u8[4096]{0}', space=vmem, size = 0x1000, scoped, tag = 'input window, operand 0, single buffered']
    #allocation4 [shape = 's32[1]{0}', space=sflag, size = 0x4, scoped, tag = 'scoped memory for tpu_custom_call.1']
    #allocation5 [shape = 's32[1]{0}', space=sflag, size = 0x4, scoped, tag = 'scoped memory for tpu_custom_call.1']
    #allocation6 [shape = 'u8[16384]{0}', space=vmem, size = 0x4000, scoped, tag = 'input window, operand 1, single buffered']
    #allocation7 [shape = 's32[1]{0}', space=sflag, size = 0x4, scoped, tag = 'scoped memory for tpu_custom_call.1']
    #allocation8 [shape = 'u8[512]{0}', space=vmem, size = 0x400, scoped, tag = 'output window, operand 0, single buffered']
    %11 = vsyncpa [#allocation4], 0
    %12 = vsyncpa [#allocation7], 0
    %13 = vsyncpa [#allocation5], 0
    // Predicated region
    $region2: #{tpu_custom_call.1} parent=1 // pred_check
      _
    $region3: #{tpu_custom_call.1} parent=1 // pred_check_branch
      %15 = sbr.rel (0) target = $region5
    $region4: #{tpu_custom_call.1} parent=1 // pred_region
      %s17 = ssub.s32 128, 128
      %18 = vsyncadd [#allocation4], %s17
      %s20 = sshll.u32 [#allocation3], 4
      %s21 = int_to_ptr.vmem [resolvable:$true] %s20
      %23 = dma.hbm_to_vmem [thread:$0]  %s0, 128, %s21, [#allocation4]
    $region5: #{tpu_custom_call.1} parent=1 // pred_fallthru
      _
    // Predicated region
    $region6: #{tpu_custom_call.1} parent=1 // pred_check
      _
    $region7: #{tpu_custom_call.1} parent=1 // pred_check_branch
      %25 = sbr.rel (0) target = $region9
    $region8: #{tpu_custom_call.1} parent=1 // pred_region
      %s27 = ssub.s32 512, 512
      %28 = vsyncadd [#allocation7], %s27
      %s29 = sshll.u32 [#allocation6], 4
      %s30 = int_to_ptr.vmem [resolvable:$true] %s29
      %35 = dma.hbm_to_vmem [thread:$0]  %s1, 512, %s30, [#allocation7], 128, 128, 8
    $region9: #{tpu_custom_call.1} parent=1 // pred_fallthru
      _
    // Predicated region
    $region10: #{tpu_custom_call.1} parent=1 // pred_check
      _
    $region11: #{tpu_custom_call.1} parent=1 // pred_check_branch
      %37 = sbr.rel (0) target = $region13
    $region12: #{tpu_custom_call.1} parent=1 // pred_region
      _
    $region13: #{tpu_custom_call.1} parent=1 // pred_fallthru
      _
    // Predicated region
    $region14: #{tpu_custom_call.1} parent=1 // pred_check
      _
    $region15: #{tpu_custom_call.1} parent=1 // pred_check_branch
      %39 = sbr.rel (0) target = $region17
    $region16: #{tpu_custom_call.1} parent=1 // pred_region
      _
    $region17: #{tpu_custom_call.1} parent=1 // pred_fallthru
      _
    // Predicated region
    $region18: #{tpu_custom_call.1} parent=1 // pred_check
      _
    $region19: #{tpu_custom_call.1} parent=1 // pred_check_branch
      %41 = sbr.rel (0) target = $region21
    $region20: #{tpu_custom_call.1} parent=1 // pred_region
      _
    $region21: #{tpu_custom_call.1} parent=1 // pred_fallthru
      _
    // Predicated region
    $region22: #{tpu_custom_call.1} parent=1 // pred_check
      _
    $region23: #{tpu_custom_call.1} parent=1 // pred_check_branch
      %43 = sbr.rel (0) target = $region25
    $region24: #{tpu_custom_call.1} parent=1 // pred_region
      %44 = dma.done [#allocation4], 128
    $region25: #{tpu_custom_call.1} parent=1 // pred_fallthru
      _
    // Predicated region
    $region26: #{tpu_custom_call.1} parent=1 // pred_check
      _
    $region27: #{tpu_custom_call.1} parent=1 // pred_check_branch
      %46 = sbr.rel (0) target = $region29
    $region28: #{tpu_custom_call.1} parent=1 // pred_region
      %47 = dma.done [#allocation7], 512
    $region29: #{tpu_custom_call.1} parent=1 // pred_fallthru
      _
    %v48 = vld [vmem:[#allocation3] sm:$0xff]
    %v49 = vld [vmem:[#allocation6] sm:$0xff]
    %v50 = vld [vmem:[#allocation6 + $0x8] sm:$0xff]
    %v51 = vld [vmem:[#allocation6 + $0x10] sm:$0xff]
    %v52 = vld [vmem:[#allocation6 + $0x18] sm:$0xff]
    %v53 = vld [vmem:[%s2] sm:$0x1]
    %v55 = vlaneseq
    %v56 = vshrl.u32 %v55, 7
    %v57 = vsub.s32 0, %v56
    %v58 = vrot.slane %v53, %v57
    %vm60 = vcmask 261120
    %v62 = vsel %vm60, %v48, 0
    %64 = vmatprep.subr.mxu0 0.0
    %65 = vmatpush1.msra.mxu0 %v49
    %66 = vmatprep.subr.mxu0 0.0
    %67 = vmatpush1.msra.mxu0 %v50
    %68 = vmatprep.subr.mxu0 0.0
    %69 = vmatpush1.msra.mxu0 %v51
    %70 = vmatprep.subr.mxu0 0.0
    %71 = vmatpush1.msra.mxu0 %v52
    %72 = vmatprep.subr.mxu0 0.0
    %73 = vmatpush1.msra.mxu0 0.0
    %74 = vmatprep.subr.mxu0 0.0
    %75 = vmatpush1.msra.mxu0 0.0
    %76 = vmatprep.subr.mxu0 0.0
    %77 = vmatpush1.msra.mxu0 0.0
    %78 = vmatprep.subr.mxu0 0.0
    %79 = vmatpush1.msra.mxu0 0.0
    %80 = vmatprep.subr.mxu0 0.0
    %81 = vmatpush1.msra.mxu0 0.0
    %82 = vmatprep.subr.mxu0 0.0
    %83 = vmatpush1.msra.mxu0 0.0
    %84 = vmatprep.subr.mxu0 0.0
    %85 = vmatpush1.msra.mxu0 0.0
    %86 = vmatprep.subr.mxu0 0.0
    %87 = vmatpush1.msra.mxu0 0.0
    %88 = vmatprep.subr.mxu0 0.0
    %89 = vmatpush1.msra.mxu0 0.0
    %90 = vmatprep.subr.mxu0 0.0
    %91 = vmatpush1.msra.mxu0 0.0
    %92 = vmatprep.subr.mxu0 0.0
    %93 = vmatpush1.msra.mxu0 0.0
    %94 = vmatprep.subr.mxu0 0.0
    %95 = vmatpush1.msra.mxu0 0.0
    %96 = vmatprep.subr.mxu0 0.0
    %97 = vmatpush1.msra.mxu0 0.0
    %98 = vmatprep.subr.mxu0 0.0
    %99 = vmatpush1.msra.mxu0 0.0
    %100 = vmatprep.subr.mxu0 0.0
    %101 = vmatpush1.msra.mxu0 0.0
    %102 = vmatprep.subr.mxu0 0.0
    %103 = vmatpush1.msra.mxu0 0.0
    %104 = vmatprep.subr.mxu0 0.0
    %105 = vmatpush1.msra.mxu0 0.0
    %106 = vmatprep.subr.mxu0 0.0
    %107 = vmatpush1.msra.mxu0 0.0
    %108 = vmatprep.subr.mxu0 0.0
    %109 = vmatpush1.msra.mxu0 0.0
    %110 = vmatprep.subr.mxu0 0.0
    %111 = vmatpush1.msra.mxu0 0.0
    %112 = vmatprep.subr.mxu0 0.0
    %113 = vmatpush1.msra.mxu0 0.0
    %114 = vmatprep.subr.mxu0 0.0
    %115 = vmatpush1.msra.mxu0 0.0
    %116 = vmatprep.subr.mxu0 0.0
    %117 = vmatpush1.msra.mxu0 0.0
    %118 = vmatprep.subr.mxu0 0.0
    %119 = vmatpush1.msra.mxu0 0.0
    %120 = vmatprep.subr.mxu0 0.0
    %121 = vmatpush1.msra.mxu0 0.0
    %122 = vmatprep.subr.mxu0 0.0
    %123 = vmatpush1.msra.mxu0 0.0
    %124 = vmatprep.subr.mxu0 0.0
    %125 = vmatpush1.msra.mxu0 0.0
    %126 = vmatprep.subr.mxu0 0.0
    %127 = vmatpush1.msra.mxu0 0.0
    %128 = vmatprep.mubr.f32.mxu0 0.0
    %129 = vmatmul.mubr.f32.gmra.mrb[0].mxu0 %v62
    %v130 = vpop.f32.mrb[0].mxu0
    %v131 = vadd.f32 %v58, %v130
    %v132 = vpop.f32.mrb[0].mxu0
    %133 = vdwg.mxu0
    %v134 = vtanh.pop %v131
    %v135 = vld [vmem:[%s3] sm:$0x1]
    %s136 = sld [smem:[#allocation2]]
    %v137 = vstv %s136
    %vm138 = vcmask 818176
    %v140 = vsel %vm138, %v135, 0
    %v143 = vsel %vm138, %v134, 0
    %145 = vmatprep.subr.mxu0 0.0
    %146 = vmatpush1.xpose.msra.mxu0 %v143
    %147 = vmatprep.subr.mxu0 0.0
    %148 = vmatpush1.xpose.msra.mxu0 0.0
    %149 = vmatprep.subr.mxu0 0.0
    %150 = vmatpush1.xpose.msra.mxu0 0.0
    %151 = vmatprep.subr.mxu0 0.0
    %152 = vmatpush1.xpose.msra.mxu0 0.0
    %153 = vmatprep.subr.mxu0 0.0
    %154 = vmatpush1.xpose.msra.mxu0 0.0
    %155 = vmatprep.subr.mxu0 0.0
    %156 = vmatpush1.xpose.msra.mxu0 0.0
    %157 = vmatprep.subr.mxu0 0.0
    %158 = vmatpush1.xpose.msra.mxu0 0.0
    %159 = vmatprep.subr.mxu0 0.0
    %160 = vmatpush1.xpose.msra.mxu0 0.0
    %161 = vmatprep.subr.mxu0 0.0
    %162 = vmatpush1.xpose.msra.mxu0 0.0
    %163 = vmatprep.subr.mxu0 0.0
    %164 = vmatpush1.xpose.msra.mxu0 0.0
    %165 = vmatprep.subr.mxu0 0.0
    %166 = vmatpush1.xpose.msra.mxu0 0.0
    %167 = vmatprep.subr.mxu0 0.0
    %168 = vmatpush1.xpose.msra.mxu0 0.0
    %169 = vmatprep.subr.mxu0 0.0
    %170 = vmatpush1.xpose.msra.mxu0 0.0
    %171 = vmatprep.subr.mxu0 0.0
    %172 = vmatpush1.xpose.msra.mxu0 0.0
    %173 = vmatprep.subr.mxu0 0.0
    %174 = vmatpush1.xpose.msra.mxu0 0.0
    %175 = vmatprep.subr.mxu0 0.0
    %176 = vmatpush1.xpose.msra.mxu0 0.0
    %177 = vmatprep.subr.mxu0 0.0
    %178 = vmatpush1.xpose.msra.mxu0 0.0
    %179 = vmatprep.subr.mxu0 0.0
    %180 = vmatpush1.xpose.msra.mxu0 0.0
    %181 = vmatprep.subr.mxu0 0.0
    %182 = vmatpush1.xpose.msra.mxu0 0.0
    %183 = vmatprep.subr.mxu0 0.0
    %184 = vmatpush1.xpose.msra.mxu0 0.0
    %185 = vmatprep.subr.mxu0 0.0
    %186 = vmatpush1.xpose.msra.mxu0 0.0
    %187 = vmatprep.subr.mxu0 0.0
    %188 = vmatpush1.xpose.msra.mxu0 0.0
    %189 = vmatprep.subr.mxu0 0.0
    %190 = vmatpush1.xpose.msra.mxu0 0.0
    %191 = vmatprep.subr.mxu0 0.0
    %192 = vmatpush1.xpose.msra.mxu0 0.0
    %193 = vmatprep.subr.mxu0 0.0
    %194 = vmatpush1.xpose.msra.mxu0 0.0
    %195 = vmatprep.subr.mxu0 0.0
    %196 = vmatpush1.xpose.msra.mxu0 0.0
    %197 = vmatprep.subr.mxu0 0.0
    %198 = vmatpush1.xpose.msra.mxu0 0.0
    %199 = vmatprep.subr.mxu0 0.0
    %200 = vmatpush1.xpose.msra.mxu0 0.0
    %201 = vmatprep.subr.mxu0 0.0
    %202 = vmatpush1.xpose.msra.mxu0 0.0
    %203 = vmatprep.subr.mxu0 0.0
    %204 = vmatpush1.xpose.msra.mxu0 0.0
    %205 = vmatprep.subr.mxu0 0.0
    %206 = vmatpush1.xpose.msra.mxu0 0.0
    %207 = vmatprep.subr.mxu0 0.0
    %208 = vmatpush1.xpose.msra.mxu0 0.0
    %209 = vmatprep.mubr.f32.mxu0 0.0
    %210 = vmatmul.mubr.f32.gmra.mrb[0].mxu0 %v140
    %v211 = vpop.f32.mrb[0].mxu0
    %v212 = vadd.f32 %v137, %v211
    %v213 = vpop.f32.mrb[0].mxu0
    %214 = vdwg.mxu0
    %vm215 = vcmask 57344
    %216 = vst.msk [vmem:[#allocation8] sm:$0x1] %vm215, %v212
    // Predicated region
    $region30: #{tpu_custom_call.1} parent=1 // pred_check
      _
    $region31: #{tpu_custom_call.1} parent=1 // pred_check_branch
      %218 = sbr.rel (0) target = $region33
    $region32: #{tpu_custom_call.1} parent=1 // pred_region
      %s220 = ssub.s32 16, 16
      %221 = vsyncadd [#allocation5], %s220
      %s223 = sshll.u32 [#allocation8], 4
      %s224 = int_to_ptr.vmem [resolvable:$true] %s223
      %226 = dma.vmem_to_hbm [thread:$0]  %s224, 16, %s5, [#allocation5]
    $region33: #{tpu_custom_call.1} parent=1 // pred_fallthru
      _
    // Predicated region
    $region34: #{tpu_custom_call.1} parent=1 // pred_check
      _
    $region35: #{tpu_custom_call.1} parent=1 // pred_check_branch
      %228 = sbr.rel (0) target = $region37
    $region36: #{tpu_custom_call.1} parent=1 // pred_region
      %229 = dma.done [#allocation5], 16
    $region37: #{tpu_custom_call.1} parent=1 // pred_fallthru
      _
    %230 = vsyncpa [#allocation4], 1
    %231 = vsyncpa [#allocation7], 1
    %232 = vsyncpa [#allocation5], 1

</llo_original>
